<compile_context>
chip_gen: v7x
topology: tpu7x:2x2x1
jax: 0.10.0
libtpu: 0.0.40
codegen_flags: <defaults>
</compile_context>

<pallas_src>
import functools

import numpy as np
import jax
import jax.numpy as jnp
from jax import lax
from jax.experimental import pallas as pl
from jax.experimental.pallas import tpu as pltpu


# ----------------------------------------------------------------------------
# Cached geometry constants (built once per shape, constants under jit).
# ----------------------------------------------------------------------------
@functools.lru_cache(maxsize=None)
def _conv_tap_masks(N, H, W):
    """(9, N*H*W) validity masks for the 9 taps of a padded 3x3 conv."""
    h = np.arange(H)[:, None]
    w = np.arange(W)[None, :]
    masks = np.zeros((9, N * H * W), np.float32)
    for k in range(9):
        dy, dx = k // 3 - 1, k % 3 - 1
        valid = (h + dy >= 0) & (h + dy < H) & (w + dx >= 0) & (w + dx < W)
        masks[k] = np.tile(valid.astype(np.float32).reshape(-1), N)
    return jnp.asarray(masks)


@functools.lru_cache(maxsize=None)
def _pool_matrix(H, W):
    """Per-sample (H*W, Ho*Wo) 0.25 matrix realizing avg_pool2d(2)."""
    Ho, Wo = H // 2, W // 2
    p = np.arange(H * W)
    h, w = p // W, p % W
    po = (h // 2) * Wo + (w // 2)
    P = np.zeros((H * W, Ho * Wo), np.float32)
    P[p, po] = 0.25
    return jnp.asarray(P, dtype=jnp.bfloat16)


# ----------------------------------------------------------------------------
# Pallas kernel: whole forward in one invocation, everything VMEM-resident.
# ----------------------------------------------------------------------------
def _resblock_kernel(x_ref, w1s_ref, w2_ref, maps_ref, mask_ref, pool_ref,
                     out_ref, *, N, H, W, Cout, slope):
    HW = H * W
    NP = N * HW
    C = Cout

    def conv_taps(a):
        # 9 zero-padded (dy, dx) shifts of `a`, each masked in f32 and cast to
        # bf16 as it is produced (keeps the patch at ~half the vreg footprint).
        pieces = []
        for k in range(9):
            dy, dx = k // 3 - 1, k % 3 - 1
            off = dy * W + dx
            if off == 0:
                pieces.append(a.astype(jnp.bfloat16))
            else:
                # pltpu.roll == np.roll; s[p] = a[p + off]; wrap lanes are
                # zeroed by the tap mask (covers both image- and sample-edges).
                s = pltpu.roll(a, shift=(-off) % NP, axis=1)
                pieces.append((s * mask_ref[k:k + 1, :]).astype(jnp.bfloat16))
        return jnp.concatenate(pieces, axis=0)            # (9*rows(a), NP) bf16

    # ---- conv1 + spectral-norm 1x1 skip fused: one MXU contraction ----
    #   rows [0:C]   = conv1(x)
    #   rows [C:2C]  = skip(x)   (weights only in center-tap columns)
    patch1 = conv_taps(x_ref[...])
    h1s = jnp.dot(w1s_ref[...], patch1, preferred_element_type=jnp.float32)
    h1, skip = h1s[:C, :], h1s[C:, :]

    # class-conditional affine (weight1 * out + bias1) + leaky_relu(0.2)
    out1 = maps_ref[0:C, :] * h1 + maps_ref[C:2 * C, :]
    out1 = jnp.where(out1 >= 0, out1, slope * out1)

    # ---- conv2: (Cout, 9*Cout) @ (9*Cout, NP) ----
    patch2 = conv_taps(out1)
    h2 = jnp.dot(w2_ref[...], patch2, preferred_element_type=jnp.float32)
    out2 = maps_ref[2 * C:3 * C, :] * h2 + maps_ref[3 * C:4 * C, :]

    res = out2 + skip                                     # (C, NP) f32

    # ---- avg_pool2d(2): per-sample matmul against shared (HW, Ho*Wo) ----
    pool = pool_ref[...]
    pooled = jnp.concatenate(
        [jnp.dot(res[:, n * HW:(n + 1) * HW].astype(jnp.bfloat16), pool,
                 preferred_element_type=jnp.float32) for n in range(N)],
        axis=1)                                           # (C, N*Ho*Wo)
    pooled = jnp.where(pooled >= 0, pooled, slope * pooled)   # final leaky_relu
    out_ref[...] = pooled


# ----------------------------------------------------------------------------
# One-time parameter packing (hoisted out of the per-call path).
# ----------------------------------------------------------------------------
def pack_resblock_params(w1_oihw, w2_oihw, wskip_oihw, embed_weight):
    Cout, Cin = int(w1_oihw.shape[0]), int(w1_oihw.shape[1])
    CP = ((Cin + 7) // 8) * 8           # pad input channels to a sublane tile

    # conv1 OIHW -> (Cout, 9*CP); column order (tap, channel)
    w1 = jnp.transpose(w1_oihw, (0, 2, 3, 1))             # (Cout, 3, 3, Cin)
    w1 = jnp.pad(w1, ((0, 0), (0, 0), (0, 0), (0, CP - Cin)))
    w1 = w1.reshape(Cout, 9 * CP)

    # skip 1x1 conv -> Cout extra rows, non-zero only in center-tap columns
    wskip = jnp.pad(wskip_oihw[:, :, 0, 0], ((0, 0), (0, CP - Cin)))
    skip_rows = jnp.zeros((Cout, 9 * CP), w1.dtype)
    skip_rows = skip_rows.at[:, 4 * CP:5 * CP].set(wskip)
    w1s = jnp.concatenate([w1, skip_rows], axis=0).astype(jnp.bfloat16)

    # conv2 OIHW -> (Cout, 9*Cout)
    w2 = jnp.transpose(w2_oihw, (0, 2, 3, 1)).reshape(Cout, 9 * Cout)
    w2 = w2.astype(jnp.bfloat16)

    # embedding columns reordered to (weight1, bias1, weight2, bias2) so the
    # per-call path is just a gather + lane repeat.
    e = embed_weight
    embed_packed = jnp.concatenate(
        [e[:, :Cout], e[:, 2 * Cout:3 * Cout],
         e[:, Cout:2 * Cout], e[:, 3 * Cout:]], axis=1).astype(jnp.float32)

    return w1s, w2, embed_packed


# ----------------------------------------------------------------------------
# Jitted forward: only cheap layout plumbing + one pallas_call.
# ----------------------------------------------------------------------------
@jax.jit
def resblock_v2_forward(x_nchw, class_id, w1s, w2, embed_packed):
    N, Cin, H, W = map(int, x_nchw.shape)
    Cout = int(w2.shape[0])
    CP = int(w1s.shape[1]) // 9
    Ho, Wo = H // 2, W // 2
    HW, NP, HWo = H * W, N * H * W, Ho * Wo

    # activations: (channels, N*H*W) with lane order (n, h, w)
    x_cn = jnp.transpose(x_nchw.reshape(N, Cin, HW), (1, 0, 2)).reshape(Cin, NP)
    x_cn = jnp.pad(x_cn, ((0, CP - Cin), (0, 0))).astype(jnp.float32)

    # lane-dense per-sample class-conditional maps: (4*Cout, NP)
    gb = embed_packed[class_id].T                         # (4*Cout, N)
    maps = jnp.repeat(gb, HW, axis=1)                     # (4*Cout, NP)

    tap_mask = _conv_tap_masks(N, H, W)                   # (9, NP)   f32
    pool_mat = _pool_matrix(H, W)                         # (HW, HWo) bf16

    kernel = functools.partial(_resblock_kernel, N=N, H=H, W=W, Cout=Cout,
                               slope=0.2)

    out = pl.pallas_call(
        kernel,
        out_shape=jax.ShapeDtypeStruct((Cout, N * HWo), jnp.float32),
        grid_spec=pltpu.PrefetchScalarGridSpec(
            num_scalar_prefetch=0,
            grid=(1,),
            in_specs=[
                pl.BlockSpec((CP, NP), lambda i: (0, 0)),
                pl.BlockSpec((2 * Cout, 9 * CP), lambda i: (0, 0)),
                pl.BlockSpec((Cout, 9 * Cout), lambda i: (0, 0)),
                pl.BlockSpec((4 * Cout, NP), lambda i: (0, 0)),
                pl.BlockSpec((9, NP), lambda i: (0, 0)),
                pl.BlockSpec((HW, HWo), lambda i: (0, 0)),
            ],
            out_specs=pl.BlockSpec((Cout, N * HWo), lambda i: (0, 0)),
        ),
        compiler_params=pltpu.CompilerParams(
            dimension_semantics=("arbitrary",)),
    )(x_cn, w1s, w2, maps, tap_mask, pool_mat)

    # (Cout, N*Ho*Wo) -> (N, Cout, Ho, Wo)  (tiny edge transpose)
    return jnp.transpose(out.reshape(Cout, N, Ho, Wo), (1, 0, 2, 3))


# ----------------------------------------------------------------------------
# Parameter setup helpers + pure-JAX reference (for the in-script check).
# ----------------------------------------------------------------------------
def spectral_norm(w, key, n_iter=50):
    """Divide conv weight (OIHW) by its spectral norm (power iteration)."""
    w_mat = w.reshape(w.shape[0], -1)
    u = jax.random.normal(key, (w_mat.shape[0],), jnp.float32)
    u = u / (jnp.linalg.norm(u) + 1e-12)
    v = jnp.zeros((w_mat.shape[1],), jnp.float32)
    for _ in range(n_iter):
        v = w_mat.T @ u
        v = v / (jnp.linalg.norm(v) + 1e-12)
        u = w_mat @ v
        u = u / (jnp.linalg.norm(u) + 1e-12)
    sigma = u @ (w_mat @ v)
    return w / sigma


def ref_forward(x_nchw, class_id, w1_oihw, w2_oihw, wskip_oihw, embed_weight):
    """Pure-JAX reference mirroring the PyTorch forward."""
    N, Cin, H, W = x_nchw.shape
    Cout = w1_oihw.shape[0]
    dn = ('NHWC', 'HWIO', 'NHWC')
    x = jnp.transpose(x_nchw, (0, 2, 3, 1))
    w1 = jnp.transpose(w1_oihw, (2, 3, 1, 0))
    w2 = jnp.transpose(w2_oihw, (2, 3, 1, 0))
    ws = jnp.transpose(wskip_oihw, (2, 3, 1, 0))
    embed = embed_weight[class_id]
    g1 = embed[:, :Cout][:, None, None, :]
    g2 = embed[:, Cout:2 * Cout][:, None, None, :]
    b1 = embed[:, 2 * Cout:3 * Cout][:, None, None, :]
    b2 = embed[:, 3 * Cout:][:, None, None, :]
    lrelu = lambda v: jnp.where(v >= 0, v, 0.2 * v)

    out = lax.conv_general_dilated(x, w1, (1, 1), 'SAME', dimension_numbers=dn)
    out = g1 * out + b1
    out = lrelu(out)
    out = lax.conv_general_dilated(out, w2, (1, 1), 'SAME', dimension_numbers=dn)
    out = g2 * out + b2
    skip = lax.conv_general_dilated(x, ws, (1, 1), 'SAME', dimension_numbers=dn)
    out = out + skip
    out = out.reshape(N, H // 2, 2, W // 2, 2, Cout).mean(axis=(2, 4))
    out = lrelu(out)
    return jnp.transpose(out, (0, 3, 1, 2))


if __name__ == "__main__":
    N, Cin, Cout, H, W = 2, 4, 8, 16, 16
    n_class = 10

    key = jax.random.PRNGKey(0)
    k = jax.random.split(key, 8)

    x = jax.random.normal(k[0], (N, Cin, H, W), jnp.float32)
    class_id = jnp.array([3, 7], dtype=jnp.int32)

    # Conv weights in PyTorch OIHW layout, spectral-normalized.
    # TODO(synk): spectral-norm power iteration is parameter preprocessing
    # (part of the parametrization, not the forward data path) and stays in JAX.
    w1 = 0.1 * jax.random.normal(k[1], (Cout, Cin, 3, 3), jnp.float32)
    w2 = 0.1 * jax.random.normal(k[2], (Cout, Cout, 3, 3), jnp.float32)
    wskip = 0.1 * jax.random.normal(k[3], (Cout, Cin, 1, 1), jnp.float32)
    w1 = spectral_norm(w1, k[4])
    w2 = spectral_norm(w2, k[5])
    wskip = spectral_norm(wskip, k[6])

    # Class embedding: module init (scales=1, biases=0) plus a small
    # perturbation so per-sample/per-channel affine paths are exercised.
    embed_weight = jnp.concatenate(
        [jnp.ones((n_class, 2 * Cout), jnp.float32),
         jnp.zeros((n_class, 2 * Cout), jnp.float32)], axis=1)
    embed_weight = embed_weight + 0.1 * jax.random.normal(
        k[7], embed_weight.shape, jnp.float32)

    # Pack once (hoisted out of the per-call path), then run the jitted forward.
    w1s_p, w2_p, embed_p = pack_resblock_params(w1, w2, wskip, embed_weight)
    out = resblock_v2_forward(x, class_id, w1s_p, w2_p, embed_p)
    out = jax.block_until_ready(out)

    ref = ref_forward(x, class_id, w1, w2, wskip, embed_weight)
    np.testing.assert_allclose(np.asarray(out), np.asarray(ref),
                               rtol=2e-2, atol=2e-2)
    print("KERNEL_OK")
</pallas_src>

<mosaic_0001>
module attributes {stable_mosaic.version = 11 : i64} {
  func.func @_resblock_kernel(%arg0: i32, %arg1: memref<8x512xf32, #tpu.memory_space<vmem>>, %arg2: memref<16x72xbf16, #tpu.memory_space<vmem>>, %arg3: memref<8x72xbf16, #tpu.memory_space<vmem>>, %arg4: memref<32x512xf32, #tpu.memory_space<vmem>>, %arg5: memref<9x512xf32, #tpu.memory_space<vmem>>, %arg6: memref<256x64xbf16, #tpu.memory_space<vmem>>, %arg7: memref<8x128xf32, #tpu.memory_space<vmem>>) attributes {dimension_semantics = [#tpu.dimension_semantics<arbitrary>], iteration_bounds = array<i64: 1>, scalar_prefetch = 0 : i64, scratch_operands = 0 : i64, tpu.core_type = #tpu.core_type<tc>, window_params = [{pipeline_mode = #tpu.pipeline_mode<synchronous>, transform_indices = @transform_0, window_bounds = array<i64: 8, 512>}, {pipeline_mode = #tpu.pipeline_mode<synchronous>, transform_indices = @transform_1, window_bounds = array<i64: 16, 72>}, {pipeline_mode = #tpu.pipeline_mode<synchronous>, transform_indices = @transform_2, window_bounds = array<i64: 8, 72>}, {pipeline_mode = #tpu.pipeline_mode<synchronous>, transform_indices = @transform_3, window_bounds = array<i64: 32, 512>}, {pipeline_mode = #tpu.pipeline_mode<synchronous>, transform_indices = @transform_4, window_bounds = array<i64: 9, 512>}, {pipeline_mode = #tpu.pipeline_mode<synchronous>, transform_indices = @transform_5, window_bounds = array<i64: 256, 64>}, {pipeline_mode = #tpu.pipeline_mode<synchronous>, transform_indices = @transform_6, window_bounds = array<i64: 8, 128>}]} {
    %c0 = arith.constant 0 : index
    %c0_0 = arith.constant 0 : index
    %0 = vector.load %arg1[%c0, %c0_0] : memref<8x512xf32, #tpu.memory_space<vmem>>, vector<8x512xf32>
    %c17_i32 = arith.constant 17 : i32
    %1 = tpu.dynamic_rotate %0 by %c17_i32 dim 1 : vector<8x512xf32>, i32 -> vector<8x512xf32>
    %c0_1 = arith.constant 0 : index
    %c0_2 = arith.constant 0 : index
    %2 = vector.load %arg5[%c0_1, %c0_2] : memref<9x512xf32, #tpu.memory_space<vmem>>, vector<1x512xf32>
    %3 = vector.broadcast %2 : vector<1x512xf32> to vector<8x512xf32>
    %4 = arith.mulf %1, %3 : vector<8x512xf32>
    %5 = arith.truncf %4 : vector<8x512xf32> to vector<8x512xbf16>
    %c16_i32 = arith.constant 16 : i32
    %6 = tpu.dynamic_rotate %0 by %c16_i32 dim 1 : vector<8x512xf32>, i32 -> vector<8x512xf32>
    %c1 = arith.constant 1 : index
    %c0_3 = arith.constant 0 : index
    %7 = vector.load %arg5[%c1, %c0_3] : memref<9x512xf32, #tpu.memory_space<vmem>>, vector<1x512xf32>
    %8 = vector.broadcast %7 : vector<1x512xf32> to vector<8x512xf32>
    %9 = arith.mulf %6, %8 : vector<8x512xf32>
    %10 = arith.truncf %9 : vector<8x512xf32> to vector<8x512xbf16>
    %c15_i32 = arith.constant 15 : i32
    %11 = tpu.dynamic_rotate %0 by %c15_i32 dim 1 : vector<8x512xf32>, i32 -> vector<8x512xf32>
    %c2 = arith.constant 2 : index
    %c0_4 = arith.constant 0 : index
    %12 = vector.load %arg5[%c2, %c0_4] : memref<9x512xf32, #tpu.memory_space<vmem>>, vector<1x512xf32>
    %13 = vector.broadcast %12 : vector<1x512xf32> to vector<8x512xf32>
    %14 = arith.mulf %11, %13 : vector<8x512xf32>
    %15 = arith.truncf %14 : vector<8x512xf32> to vector<8x512xbf16>
    %c1_i32 = arith.constant 1 : i32
    %16 = tpu.dynamic_rotate %0 by %c1_i32 dim 1 : vector<8x512xf32>, i32 -> vector<8x512xf32>
    %c3 = arith.constant 3 : index
    %c0_5 = arith.constant 0 : index
    %17 = vector.load %arg5[%c3, %c0_5] : memref<9x512xf32, #tpu.memory_space<vmem>>, vector<1x512xf32>
    %18 = vector.broadcast %17 : vector<1x512xf32> to vector<8x512xf32>
    %19 = arith.mulf %16, %18 : vector<8x512xf32>
    %20 = arith.truncf %19 : vector<8x512xf32> to vector<8x512xbf16>
    %21 = arith.truncf %0 : vector<8x512xf32> to vector<8x512xbf16>
    %c511_i32 = arith.constant 511 : i32
    %22 = tpu.dynamic_rotate %0 by %c511_i32 dim 1 : vector<8x512xf32>, i32 -> vector<8x512xf32>
    %c5 = arith.constant 5 : index
    %c0_6 = arith.constant 0 : index
    %23 = vector.load %arg5[%c5, %c0_6] : memref<9x512xf32, #tpu.memory_space<vmem>>, vector<1x512xf32>
    %24 = vector.broadcast %23 : vector<1x512xf32> to vector<8x512xf32>
    %25 = arith.mulf %22, %24 : vector<8x512xf32>
    %26 = arith.truncf %25 : vector<8x512xf32> to vector<8x512xbf16>
    %c497_i32 = arith.constant 497 : i32
    %27 = tpu.dynamic_rotate %0 by %c497_i32 dim 1 : vector<8x512xf32>, i32 -> vector<8x512xf32>
    %c6 = arith.constant 6 : index
    %c0_7 = arith.constant 0 : index
    %28 = vector.load %arg5[%c6, %c0_7] : memref<9x512xf32, #tpu.memory_space<vmem>>, vector<1x512xf32>
    %29 = vector.broadcast %28 : vector<1x512xf32> to vector<8x512xf32>
    %30 = arith.mulf %27, %29 : vector<8x512xf32>
    %31 = arith.truncf %30 : vector<8x512xf32> to vector<8x512xbf16>
    %c496_i32 = arith.constant 496 : i32
    %32 = tpu.dynamic_rotate %0 by %c496_i32 dim 1 : vector<8x512xf32>, i32 -> vector<8x512xf32>
    %c7 = arith.constant 7 : index
    %c0_8 = arith.constant 0 : index
    %33 = vector.load %arg5[%c7, %c0_8] : memref<9x512xf32, #tpu.memory_space<vmem>>, vector<1x512xf32>
    %34 = vector.broadcast %33 : vector<1x512xf32> to vector<8x512xf32>
    %35 = arith.mulf %32, %34 : vector<8x512xf32>
    %36 = arith.truncf %35 : vector<8x512xf32> to vector<8x512xbf16>
    %c495_i32 = arith.constant 495 : i32
    %37 = tpu.dynamic_rotate %0 by %c495_i32 dim 1 : vector<8x512xf32>, i32 -> vector<8x512xf32>
    %c8 = arith.constant 8 : index
    %c0_9 = arith.constant 0 : index
    %38 = vector.load %arg5[%c8, %c0_9] : memref<9x512xf32, #tpu.memory_space<vmem>>, vector<1x512xf32>
    %39 = vector.broadcast %38 : vector<1x512xf32> to vector<8x512xf32>
    %40 = arith.mulf %37, %39 : vector<8x512xf32>
    %41 = arith.truncf %40 : vector<8x512xf32> to vector<8x512xbf16>
    %42 = tpu.concatenate %5, %10, %15, %20, %21, %26, %31, %36, %41 in 0 : vector<8x512xbf16>, vector<8x512xbf16>, vector<8x512xbf16>, vector<8x512xbf16>, vector<8x512xbf16>, vector<8x512xbf16>, vector<8x512xbf16>, vector<8x512xbf16>, vector<8x512xbf16> -> vector<72x512xbf16>
    %c0_10 = arith.constant 0 : index
    %c0_11 = arith.constant 0 : index
    %43 = vector.load %arg2[%c0_10, %c0_11] : memref<16x72xbf16, #tpu.memory_space<vmem>>, vector<16x72xbf16>
    %cst = arith.constant dense<0.000000e+00> : vector<16x512xf32>
    %44 = tpu.matmul %43, %42, %cst {dimension_numbers = #tpu.dot_dimension_numbers<[1], [0], [0], [1], [0, 0, 1, 1], [], []>} : vector<16x72xbf16>, vector<72x512xbf16>, vector<16x512xf32> -> vector<16x512xf32>
    %45 = vector.extract_strided_slice %44 {offsets = [0, 0], sizes = [8, 512], strides = [1, 1]} : vector<16x512xf32> to vector<8x512xf32>
    %46 = vector.extract_strided_slice %44 {offsets = [8, 0], sizes = [8, 512], strides = [1, 1]} : vector<16x512xf32> to vector<8x512xf32>
    %c0_12 = arith.constant 0 : index
    %c0_13 = arith.constant 0 : index
    %47 = vector.load %arg4[%c0_12, %c0_13] : memref<32x512xf32, #tpu.memory_space<vmem>>, vector<8x512xf32>
    %48 = arith.mulf %47, %45 : vector<8x512xf32>
    %c8_14 = arith.constant 8 : index
    %c0_15 = arith.constant 0 : index
    %49 = vector.load %arg4[%c8_14, %c0_15] : memref<32x512xf32, #tpu.memory_space<vmem>>, vector<8x512xf32>
    %50 = arith.addf %48, %49 : vector<8x512xf32>
    %cst_16 = arith.constant 0.000000e+00 : f32
    %51 = vector.broadcast %cst_16 : f32 to vector<8x512xf32>
    %52 = arith.cmpf oge, %50, %51 : vector<8x512xf32>
    %cst_17 = arith.constant 2.000000e-01 : f32
    %53 = vector.broadcast %cst_17 : f32 to vector<8x512xf32>
    %54 = arith.mulf %53, %50 : vector<8x512xf32>
    %55 = arith.select %52, %50, %54 : vector<8x512xi1>, vector<8x512xf32>
    %c17_i32_18 = arith.constant 17 : i32
    %56 = tpu.dynamic_rotate %55 by %c17_i32_18 dim 1 : vector<8x512xf32>, i32 -> vector<8x512xf32>
    %c0_19 = arith.constant 0 : index
    %c0_20 = arith.constant 0 : index
    %57 = vector.load %arg5[%c0_19, %c0_20] : memref<9x512xf32, #tpu.memory_space<vmem>>, vector<1x512xf32>
    %58 = vector.broadcast %57 : vector<1x512xf32> to vector<8x512xf32>
    %59 = arith.mulf %56, %58 : vector<8x512xf32>
    %60 = arith.truncf %59 : vector<8x512xf32> to vector<8x512xbf16>
    %c16_i32_21 = arith.constant 16 : i32
    %61 = tpu.dynamic_rotate %55 by %c16_i32_21 dim 1 : vector<8x512xf32>, i32 -> vector<8x512xf32>
    %c1_22 = arith.constant 1 : index
    %c0_23 = arith.constant 0 : index
    %62 = vector.load %arg5[%c1_22, %c0_23] : memref<9x512xf32, #tpu.memory_space<vmem>>, vector<1x512xf32>
    %63 = vector.broadcast %62 : vector<1x512xf32> to vector<8x512xf32>
    %64 = arith.mulf %61, %63 : vector<8x512xf32>
    %65 = arith.truncf %64 : vector<8x512xf32> to vector<8x512xbf16>
    %c15_i32_24 = arith.constant 15 : i32
    %66 = tpu.dynamic_rotate %55 by %c15_i32_24 dim 1 : vector<8x512xf32>, i32 -> vector<8x512xf32>
    %c2_25 = arith.constant 2 : index
    %c0_26 = arith.constant 0 : index
    %67 = vector.load %arg5[%c2_25, %c0_26] : memref<9x512xf32, #tpu.memory_space<vmem>>, vector<1x512xf32>
    %68 = vector.broadcast %67 : vector<1x512xf32> to vector<8x512xf32>
    %69 = arith.mulf %66, %68 : vector<8x512xf32>
    %70 = arith.truncf %69 : vector<8x512xf32> to vector<8x512xbf16>
    %c1_i32_27 = arith.constant 1 : i32
    %71 = tpu.dynamic_rotate %55 by %c1_i32_27 dim 1 : vector<8x512xf32>, i32 -> vector<8x512xf32>
    %c3_28 = arith.constant 3 : index
    %c0_29 = arith.constant 0 : index
    %72 = vector.load %arg5[%c3_28, %c0_29] : memref<9x512xf32, #tpu.memory_space<vmem>>, vector<1x512xf32>
    %73 = vector.broadcast %72 : vector<1x512xf32> to vector<8x512xf32>
    %74 = arith.mulf %71, %73 : vector<8x512xf32>
    %75 = arith.truncf %74 : vector<8x512xf32> to vector<8x512xbf16>
    %76 = arith.truncf %55 : vector<8x512xf32> to vector<8x512xbf16>
    %c511_i32_30 = arith.constant 511 : i32
    %77 = tpu.dynamic_rotate %55 by %c511_i32_30 dim 1 : vector<8x512xf32>, i32 -> vector<8x512xf32>
    %c5_31 = arith.constant 5 : index
    %c0_32 = arith.constant 0 : index
    %78 = vector.load %arg5[%c5_31, %c0_32] : memref<9x512xf32, #tpu.memory_space<vmem>>, vector<1x512xf32>
    %79 = vector.broadcast %78 : vector<1x512xf32> to vector<8x512xf32>
    %80 = arith.mulf %77, %79 : vector<8x512xf32>
    %81 = arith.truncf %80 : vector<8x512xf32> to vector<8x512xbf16>
    %c497_i32_33 = arith.constant 497 : i32
    %82 = tpu.dynamic_rotate %55 by %c497_i32_33 dim 1 : vector<8x512xf32>, i32 -> vector<8x512xf32>
    %c6_34 = arith.constant 6 : index
    %c0_35 = arith.constant 0 : index
    %83 = vector.load %arg5[%c6_34, %c0_35] : memref<9x512xf32, #tpu.memory_space<vmem>>, vector<1x512xf32>
    %84 = vector.broadcast %83 : vector<1x512xf32> to vector<8x512xf32>
    %85 = arith.mulf %82, %84 : vector<8x512xf32>
    %86 = arith.truncf %85 : vector<8x512xf32> to vector<8x512xbf16>
    %c496_i32_36 = arith.constant 496 : i32
    %87 = tpu.dynamic_rotate %55 by %c496_i32_36 dim 1 : vector<8x512xf32>, i32 -> vector<8x512xf32>
    %c7_37 = arith.constant 7 : index
    %c0_38 = arith.constant 0 : index
    %88 = vector.load %arg5[%c7_37, %c0_38] : memref<9x512xf32, #tpu.memory_space<vmem>>, vector<1x512xf32>
    %89 = vector.broadcast %88 : vector<1x512xf32> to vector<8x512xf32>
    %90 = arith.mulf %87, %89 : vector<8x512xf32>
    %91 = arith.truncf %90 : vector<8x512xf32> to vector<8x512xbf16>
    %c495_i32_39 = arith.constant 495 : i32
    %92 = tpu.dynamic_rotate %55 by %c495_i32_39 dim 1 : vector<8x512xf32>, i32 -> vector<8x512xf32>
    %c8_40 = arith.constant 8 : index
    %c0_41 = arith.constant 0 : index
    %93 = vector.load %arg5[%c8_40, %c0_41] : memref<9x512xf32, #tpu.memory_space<vmem>>, vector<1x512xf32>
    %94 = vector.broadcast %93 : vector<1x512xf32> to vector<8x512xf32>
    %95 = arith.mulf %92, %94 : vector<8x512xf32>
    %96 = arith.truncf %95 : vector<8x512xf32> to vector<8x512xbf16>
    %97 = tpu.concatenate %60, %65, %70, %75, %76, %81, %86, %91, %96 in 0 : vector<8x512xbf16>, vector<8x512xbf16>, vector<8x512xbf16>, vector<8x512xbf16>, vector<8x512xbf16>, vector<8x512xbf16>, vector<8x512xbf16>, vector<8x512xbf16>, vector<8x512xbf16> -> vector<72x512xbf16>
    %c0_42 = arith.constant 0 : index
    %c0_43 = arith.constant 0 : index
    %98 = vector.load %arg3[%c0_42, %c0_43] : memref<8x72xbf16, #tpu.memory_space<vmem>>, vector<8x72xbf16>
    %cst_44 = arith.constant dense<0.000000e+00> : vector<8x512xf32>
    %99 = tpu.matmul %98, %97, %cst_44 {dimension_numbers = #tpu.dot_dimension_numbers<[1], [0], [0], [1], [0, 0, 1, 1], [], []>} : vector<8x72xbf16>, vector<72x512xbf16>, vector<8x512xf32> -> vector<8x512xf32>
    %c16 = arith.constant 16 : index
    %c0_45 = arith.constant 0 : index
    %100 = vector.load %arg4[%c16, %c0_45] : memref<32x512xf32, #tpu.memory_space<vmem>>, vector<8x512xf32>
    %101 = arith.mulf %100, %99 : vector<8x512xf32>
    %c24 = arith.constant 24 : index
    %c0_46 = arith.constant 0 : index
    %102 = vector.load %arg4[%c24, %c0_46] : memref<32x512xf32, #tpu.memory_space<vmem>>, vector<8x512xf32>
    %103 = arith.addf %101, %102 : vector<8x512xf32>
    %104 = arith.addf %103, %46 : vector<8x512xf32>
    %c0_47 = arith.constant 0 : index
    %c0_48 = arith.constant 0 : index
    %105 = vector.load %arg6[%c0_47, %c0_48] : memref<256x64xbf16, #tpu.memory_space<vmem>>, vector<256x64xbf16>
    %106 = vector.extract_strided_slice %104 {offsets = [0, 0], sizes = [8, 256], strides = [1, 1]} : vector<8x512xf32> to vector<8x256xf32>
    %107 = arith.truncf %106 : vector<8x256xf32> to vector<8x256xbf16>
    %cst_49 = arith.constant dense<0.000000e+00> : vector<8x64xf32>
    %108 = tpu.matmul %107, %105, %cst_49 {dimension_numbers = #tpu.dot_dimension_numbers<[1], [0], [0], [1], [0, 0, 1, 1], [], []>} : vector<8x256xbf16>, vector<256x64xbf16>, vector<8x64xf32> -> vector<8x64xf32>
    %109 = vector.extract_strided_slice %104 {offsets = [0, 256], sizes = [8, 256], strides = [1, 1]} : vector<8x512xf32> to vector<8x256xf32>
    %110 = arith.truncf %109 : vector<8x256xf32> to vector<8x256xbf16>
    %cst_50 = arith.constant dense<0.000000e+00> : vector<8x64xf32>
    %111 = tpu.matmul %110, %105, %cst_50 {dimension_numbers = #tpu.dot_dimension_numbers<[1], [0], [0], [1], [0, 0, 1, 1], [], []>} : vector<8x256xbf16>, vector<256x64xbf16>, vector<8x64xf32> -> vector<8x64xf32>
    %112 = tpu.concatenate %108, %111 in 1 : vector<8x64xf32>, vector<8x64xf32> -> vector<8x128xf32>
    %cst_51 = arith.constant 0.000000e+00 : f32
    %113 = vector.broadcast %cst_51 : f32 to vector<8x128xf32>
    %114 = arith.cmpf oge, %112, %113 : vector<8x128xf32>
    %cst_52 = arith.constant 2.000000e-01 : f32
    %115 = vector.broadcast %cst_52 : f32 to vector<8x128xf32>
    %116 = arith.mulf %115, %112 : vector<8x128xf32>
    %117 = arith.select %114, %112, %116 : vector<8x128xi1>, vector<8x128xf32>
    %c0_53 = arith.constant 0 : index
    %c0_54 = arith.constant 0 : index
    %118 = vector.load %arg7[%c0_53, %c0_54] : memref<8x128xf32, #tpu.memory_space<vmem>>, vector<8x128xf32>
    tpu.vector_store %arg7[%c0_53, %c0_54], %117 {strides = array<i32>} : memref<8x128xf32, #tpu.memory_space<vmem>>, vector<8x128xf32>,
    return
  }
  func.func @transform_0(%arg0: i32) -> (i32, i32) {
    %c0_i32 = arith.constant 0 : i32
    %c0_i32_0 = arith.constant 0 : i32
    %c0_i32_1 = arith.constant 0 : i32
    return %c0_i32, %c0_i32_0 : i32, i32
  }
  func.func @transform_1(%arg0: i32) -> (i32, i32) {
    %c0_i32 = arith.constant 0 : i32
    %c0_i32_0 = arith.constant 0 : i32
    %c0_i32_1 = arith.constant 0 : i32
    return %c0_i32, %c0_i32_0 : i32, i32
  }
  func.func @transform_2(%arg0: i32) -> (i32, i32) {
    %c0_i32 = arith.constant 0 : i32
    %c0_i32_0 = arith.constant 0 : i32
    %c0_i32_1 = arith.constant 0 : i32
    return %c0_i32, %c0_i32_0 : i32, i32
  }
  func.func @transform_3(%arg0: i32) -> (i32, i32) {
    %c0_i32 = arith.constant 0 : i32
    %c0_i32_0 = arith.constant 0 : i32
    %c0_i32_1 = arith.constant 0 : i32
    return %c0_i32, %c0_i32_0 : i32, i32
  }
  func.func @transform_4(%arg0: i32) -> (i32, i32) {
    %c0_i32 = arith.constant 0 : i32
    %c0_i32_0 = arith.constant 0 : i32
    %c0_i32_1 = arith.constant 0 : i32
    return %c0_i32, %c0_i32_0 : i32, i32
  }
  func.func @transform_5(%arg0: i32) -> (i32, i32) {
    %c0_i32 = arith.constant 0 : i32
    %c0_i32_0 = arith.constant 0 : i32
    %c0_i32_1 = arith.constant 0 : i32
    return %c0_i32, %c0_i32_0 : i32, i32
  }
  func.func @transform_6(%arg0: i32) -> (i32, i32) {
    %c0_i32 = arith.constant 0 : i32
    %c0_i32_0 = arith.constant 0 : i32
    %c0_i32_1 = arith.constant 0 : i32
    return %c0_i32, %c0_i32_0 : i32, i32
  }
}

</mosaic_0001>

<llo_original>
// kernel: resblock_v2_forward.1
$region0: #{resblock_v2_forward.1}
  #allocation0 [shape = 'u32[]', space=smem, size = 0x4, offset = 0x4, fixed_abs, tag = 'smem constant byte address 0x4 - core index']
  #allocation1 [shape = 'u32[144,128]{1,0:T(1,128)}', space=vmem, size = 0x12000, scoped, tag = 'internal scratch']
  %s0 = inlined_call_operand.vmem [shape: f32[8,512], index: 0, kind: input, shape index: {}]
  %s1 = inlined_call_operand.vmem [shape: bf16[16,72], index: 1, kind: input, shape index: {}]
  %s2 = inlined_call_operand.vmem [shape: bf16[8,72], index: 2, kind: input, shape index: {}]
  %s3 = inlined_call_operand.vmem [shape: f32[32,512], index: 3, kind: input, shape index: {}]
  %s4 = inlined_call_operand.vmem [shape: f32[9,512], index: 4, kind: input, shape index: {}]
  %s5 = inlined_call_operand.vmem [shape: bf16[256,64], index: 5, kind: input, shape index: {}]
  %s6 = inlined_call_operand.vmem [shape: f32[8,128], index: 6, kind: output, shape index: {}]
  %s7 = sld [smem:[#allocation0]]
  $region34: #{resblock_v2_forward.1} parent=0
    _
  %s9 = ssub.s32 1, %s7
  %s10 = scalar_select 0, %s9, %s7
  // Predicated region
  $region2: #{resblock_v2_forward.1} parent=0 // pred_check
    _
  $region3: #{resblock_v2_forward.1} parent=0 // pred_check_branch
    %12 = sbr.rel (0) target = $region5
  $region4: #{resblock_v2_forward.1} parent=0 // pred_region
    _
  $region5: #{resblock_v2_forward.1} parent=0 // pred_fallthru
    _
  // Predicated region
  $region6: #{resblock_v2_forward.1} parent=0 // pred_check
    _
  $region7: #{resblock_v2_forward.1} parent=0 // pred_check_branch
    %14 = sbr.rel (0) target = $region9
  $region8: #{resblock_v2_forward.1} parent=0 // pred_region
    _
  $region9: #{resblock_v2_forward.1} parent=0 // pred_fallthru
    _
  // Predicated region
  $region10: #{resblock_v2_forward.1} parent=0 // pred_check
    _
  $region11: #{resblock_v2_forward.1} parent=0 // pred_check_branch
    %16 = sbr.rel (0) target = $region13
  $region12: #{resblock_v2_forward.1} parent=0 // pred_region
    _
  $region13: #{resblock_v2_forward.1} parent=0 // pred_fallthru
    _
  // Predicated region
  $region14: #{resblock_v2_forward.1} parent=0 // pred_check
    _
  $region15: #{resblock_v2_forward.1} parent=0 // pred_check_branch
    %18 = sbr.rel (0) target = $region17
  $region16: #{resblock_v2_forward.1} parent=0 // pred_region
    _
  $region17: #{resblock_v2_forward.1} parent=0 // pred_fallthru
    _
  // Predicated region
  $region18: #{resblock_v2_forward.1} parent=0 // pred_check
    _
  $region19: #{resblock_v2_forward.1} parent=0 // pred_check_branch
    %20 = sbr.rel (0) target = $region21
  $region20: #{resblock_v2_forward.1} parent=0 // pred_region
    _
  $region21: #{resblock_v2_forward.1} parent=0 // pred_fallthru
    _
  // Predicated region
  $region22: #{resblock_v2_forward.1} parent=0 // pred_check
    _
  $region23: #{resblock_v2_forward.1} parent=0 // pred_check_branch
    %22 = sbr.rel (0) target = $region25
  $region24: #{resblock_v2_forward.1} parent=0 // pred_region
    _
  $region25: #{resblock_v2_forward.1} parent=0 // pred_fallthru
    _
  %v24 = vld [vmem:[%s0] sm:$0xff]
  %v25 = vld [vmem:[%s0 + $0x8] sm:$0xff]
  %v26 = vld [vmem:[%s0 + $0x10] sm:$0xff]
  %v27 = vld [vmem:[%s0 + $0x18] sm:$0xff]
  %28 = vrot.lane.b32.xlu0 %v24, 17
  %v29 = vpop.permute.xlu0 %28
  %30 = vrot.lane.b32.xlu0 %v25, 17
  %v31 = vpop.permute.xlu0 %30
  %32 = vrot.lane.b32.xlu0 %v26, 17
  %v33 = vpop.permute.xlu0 %32
  %34 = vrot.lane.b32.xlu0 %v27, 17
  %v35 = vpop.permute.xlu0 %34
  %v36 = vlaneseq
  %v37 = vand.u32 %v36, 127
  %vm38 = vcmp.lt.s32.totalorder %v37, 17
  %v39 = vsel %vm38, %v33, %v35
  %v40 = vsel %vm38, %v31, %v33
  %v41 = vsel %vm38, %v29, %v31
  %v42 = vsel %vm38, %v35, %v29
  %v43 = vld [vmem:[%s4] ss:$8 sm:$0xf]
  %v45 = vlaneseq
  %v46 = vshrl.u32 %v45, 7
  %v47 = vsub.s32 0, %v46
  %v48 = vrot.slane %v43, %v47
  %v49 = vlaneseq
  %v50 = vshrl.u32 %v49, 7
  %v51 = vsub.s32 1, %v50
  %v52 = vrot.slane %v43, %v51
  %v53 = vlaneseq
  %v54 = vshrl.u32 %v53, 7
  %v55 = vsub.s32 2, %v54
  %v56 = vrot.slane %v43, %v55
  %v57 = vlaneseq
  %v58 = vshrl.u32 %v57, 7
  %v59 = vsub.s32 3, %v58
  %v60 = vrot.slane %v43, %v59
  %v65 = vmul.f32 %v42, %v48
  %v66 = vmul.f32 %v41, %v52
  %v67 = vmul.f32 %v40, %v56
  %v68 = vmul.f32 %v39, %v60
  %v69 = vpack.c.bf16 %v65, %v65
  %v70 = vpack.c.bf16 %v66, %v66
  %v71 = vpack.c.bf16 %v67, %v67
  %v72 = vpack.c.bf16 %v68, %v68
  %73 = vrot.lane.b32.xlu0 %v24, 16
  %v74 = vpop.permute.xlu0 %73
  %75 = vrot.lane.b32.xlu0 %v25, 16
  %v76 = vpop.permute.xlu0 %75
  %77 = vrot.lane.b32.xlu0 %v26, 16
  %v78 = vpop.permute.xlu0 %77
  %79 = vrot.lane.b32.xlu0 %v27, 16
  %v80 = vpop.permute.xlu0 %79
  %vm81 = vcmp.lt.s32.totalorder %v37, 16
  %v82 = vsel %vm81, %v78, %v80
  %v83 = vsel %vm81, %v76, %v78
  %v84 = vsel %vm81, %v74, %v76
  %v85 = vsel %vm81, %v80, %v74
  %s86 = scalar_lea.vmem %s4, 1
  %v87 = vld [vmem:[%s86] ss:$8 sm:$0xf]
  %v89 = vlaneseq
  %v90 = vshrl.u32 %v89, 7
  %v91 = vsub.s32 0, %v90
  %v92 = vrot.slane %v87, %v91
  %v93 = vlaneseq
  %v94 = vshrl.u32 %v93, 7
  %v95 = vsub.s32 1, %v94
  %v96 = vrot.slane %v87, %v95
  %v97 = vlaneseq
  %v98 = vshrl.u32 %v97, 7
  %v99 = vsub.s32 2, %v98
  %v100 = vrot.slane %v87, %v99
  %v101 = vlaneseq
  %v102 = vshrl.u32 %v101, 7
  %v103 = vsub.s32 3, %v102
  %v104 = vrot.slane %v87, %v103
  %v109 = vmul.f32 %v85, %v92
  %v110 = vmul.f32 %v84, %v96
  %v111 = vmul.f32 %v83, %v100
  %v112 = vmul.f32 %v82, %v104
  %v113 = vpack.c.bf16 %v109, %v109
  %v114 = vpack.c.bf16 %v110, %v110
  %v115 = vpack.c.bf16 %v111, %v111
  %v116 = vpack.c.bf16 %v112, %v112
  %117 = vrot.lane.b32.xlu0 %v24, 15
  %v118 = vpop.permute.xlu0 %117
  %119 = vrot.lane.b32.xlu0 %v25, 15
  %v120 = vpop.permute.xlu0 %119
  %121 = vrot.lane.b32.xlu0 %v26, 15
  %v122 = vpop.permute.xlu0 %121
  %123 = vrot.lane.b32.xlu0 %v27, 15
  %v124 = vpop.permute.xlu0 %123
  %vm125 = vcmp.lt.s32.totalorder %v37, 15
  %v126 = vsel %vm125, %v122, %v124
  %v127 = vsel %vm125, %v120, %v122
  %v128 = vsel %vm125, %v118, %v120
  %v129 = vsel %vm125, %v124, %v118
  %s130 = scalar_lea.vmem %s4, 2
  %v131 = vld [vmem:[%s130] ss:$8 sm:$0xf]
  %v133 = vlaneseq
  %v134 = vshrl.u32 %v133, 7
  %v135 = vsub.s32 0, %v134
  %v136 = vrot.slane %v131, %v135
  %v137 = vlaneseq
  %v138 = vshrl.u32 %v137, 7
  %v139 = vsub.s32 1, %v138
  %v140 = vrot.slane %v131, %v139
  %v141 = vlaneseq
  %v142 = vshrl.u32 %v141, 7
  %v143 = vsub.s32 2, %v142
  %v144 = vrot.slane %v131, %v143
  %v145 = vlaneseq
  %v146 = vshrl.u32 %v145, 7
  %v147 = vsub.s32 3, %v146
  %v148 = vrot.slane %v131, %v147
  %v153 = vmul.f32 %v129, %v136
  %v154 = vmul.f32 %v128, %v140
  %v155 = vmul.f32 %v127, %v144
  %v156 = vmul.f32 %v126, %v148
  %v157 = vpack.c.bf16 %v153, %v153
  %v158 = vpack.c.bf16 %v154, %v154
  %v159 = vpack.c.bf16 %v155, %v155
  %v160 = vpack.c.bf16 %v156, %v156
  %161 = vrot.lane.b32.xlu0 %v24, 1
  %v162 = vpop.permute.xlu0 %161
  %163 = vrot.lane.b32.xlu0 %v25, 1
  %v164 = vpop.permute.xlu0 %163
  %165 = vrot.lane.b32.xlu0 %v26, 1
  %v166 = vpop.permute.xlu0 %165
  %167 = vrot.lane.b32.xlu0 %v27, 1
  %v168 = vpop.permute.xlu0 %167
  %vm169 = vcmp.lt.s32.totalorder %v37, 1
  %v170 = vsel %vm169, %v166, %v168
  %v171 = vsel %vm169, %v164, %v166
  %v172 = vsel %vm169, %v162, %v164
  %v173 = vsel %vm169, %v168, %v162
  %s174 = scalar_lea.vmem %s4, 3
  %v175 = vld [vmem:[%s174] ss:$8 sm:$0xf]
  %v177 = vlaneseq
  %v178 = vshrl.u32 %v177, 7
  %v179 = vsub.s32 0, %v178
  %v180 = vrot.slane %v175, %v179
  %v181 = vlaneseq
  %v182 = vshrl.u32 %v181, 7
  %v183 = vsub.s32 1, %v182
  %v184 = vrot.slane %v175, %v183
  %v185 = vlaneseq
  %v186 = vshrl.u32 %v185, 7
  %v187 = vsub.s32 2, %v186
  %v188 = vrot.slane %v175, %v187
  %v189 = vlaneseq
  %v190 = vshrl.u32 %v189, 7
  %v191 = vsub.s32 3, %v190
  %v192 = vrot.slane %v175, %v191
  %v197 = vmul.f32 %v173, %v180
  %v198 = vmul.f32 %v172, %v184
  %v199 = vmul.f32 %v171, %v188
  %v200 = vmul.f32 %v170, %v192
  %v201 = vpack.c.bf16 %v197, %v197
  %v202 = vpack.c.bf16 %v198, %v198
  %v203 = vpack.c.bf16 %v199, %v199
  %v204 = vpack.c.bf16 %v200, %v200
  %v205 = vpack.c.bf16 %v24, %v24
  %v206 = vpack.c.bf16 %v25, %v25
  %v207 = vpack.c.bf16 %v26, %v26
  %v208 = vpack.c.bf16 %v27, %v27
  %209 = vrot.lane.b32.xlu0 %v24, 127
  %v210 = vpop.permute.xlu0 %209
  %211 = vrot.lane.b32.xlu0 %v25, 127
  %v212 = vpop.permute.xlu0 %211
  %213 = vrot.lane.b32.xlu0 %v26, 127
  %v214 = vpop.permute.xlu0 %213
  %215 = vrot.lane.b32.xlu0 %v27, 127
  %v216 = vpop.permute.xlu0 %215
  %vm217 = vcmp.lt.s32.totalorder %v37, 127
  %v218 = vsel %vm217, %v214, %v216
  %v219 = vsel %vm217, %v212, %v214
  %v220 = vsel %vm217, %v210, %v212
  %v221 = vsel %vm217, %v216, %v210
  %s222 = scalar_lea.vmem %s4, 5
  %v223 = vld [vmem:[%s222] ss:$8 sm:$0xf]
  %v225 = vlaneseq
  %v226 = vshrl.u32 %v225, 7
  %v227 = vsub.s32 0, %v226
  %v228 = vrot.slane %v223, %v227
  %v229 = vlaneseq
  %v230 = vshrl.u32 %v229, 7
  %v231 = vsub.s32 1, %v230
  %v232 = vrot.slane %v223, %v231
  %v233 = vlaneseq
  %v234 = vshrl.u32 %v233, 7
  %v235 = vsub.s32 2, %v234
  %v236 = vrot.slane %v223, %v235
  %v237 = vlaneseq
  %v238 = vshrl.u32 %v237, 7
  %v239 = vsub.s32 3, %v238
  %v240 = vrot.slane %v223, %v239
  %v245 = vmul.f32 %v220, %v228
  %v246 = vmul.f32 %v219, %v232
  %v247 = vmul.f32 %v218, %v236
  %v248 = vmul.f32 %v221, %v240
  %v249 = vpack.c.bf16 %v245, %v245
  %v250 = vpack.c.bf16 %v246, %v246
  %v251 = vpack.c.bf16 %v247, %v247
  %v252 = vpack.c.bf16 %v248, %v248
  %253 = vrot.lane.b32.xlu0 %v24, 113
  %v254 = vpop.permute.xlu0 %253
  %255 = vrot.lane.b32.xlu0 %v25, 113
  %v256 = vpop.permute.xlu0 %255
  %257 = vrot.lane.b32.xlu0 %v26, 113
  %v258 = vpop.permute.xlu0 %257
  %259 = vrot.lane.b32.xlu0 %v27, 113
  %v260 = vpop.permute.xlu0 %259
  %vm261 = vcmp.lt.s32.totalorder %v37, 113
  %v262 = vsel %vm261, %v258, %v260
  %v263 = vsel %vm261, %v256, %v258
  %v264 = vsel %vm261, %v254, %v256
  %v265 = vsel %vm261, %v260, %v254
  %s266 = scalar_lea.vmem %s4, 6
  %v267 = vld [vmem:[%s266] ss:$8 sm:$0xf]
  %v269 = vlaneseq
  %v270 = vshrl.u32 %v269, 7
  %v271 = vsub.s32 0, %v270
  %v272 = vrot.slane %v267, %v271
  %v273 = vlaneseq
  %v274 = vshrl.u32 %v273, 7
  %v275 = vsub.s32 1, %v274
  %v276 = vrot.slane %v267, %v275
  %v277 = vlaneseq
  %v278 = vshrl.u32 %v277, 7
  %v279 = vsub.s32 2, %v278
  %v280 = vrot.slane %v267, %v279
  %v281 = vlaneseq
  %v282 = vshrl.u32 %v281, 7
  %v283 = vsub.s32 3, %v282
  %v284 = vrot.slane %v267, %v283
  %v289 = vmul.f32 %v264, %v272
  %v290 = vmul.f32 %v263, %v276
  %v291 = vmul.f32 %v262, %v280
  %v292 = vmul.f32 %v265, %v284
  %v293 = vpack.c.bf16 %v289, %v289
  %v294 = vpack.c.bf16 %v290, %v290
  %v295 = vpack.c.bf16 %v291, %v291
  %v296 = vpack.c.bf16 %v292, %v292
  %297 = vrot.lane.b32.xlu0 %v24, 112
  %v298 = vpop.permute.xlu0 %297
  %299 = vrot.lane.b32.xlu0 %v25, 112
  %v300 = vpop.permute.xlu0 %299
  %301 = vrot.lane.b32.xlu0 %v26, 112
  %v302 = vpop.permute.xlu0 %301
  %303 = vrot.lane.b32.xlu0 %v27, 112
  %v304 = vpop.permute.xlu0 %303
  %vm305 = vcmp.lt.s32.totalorder %v37, 112
  %v306 = vsel %vm305, %v302, %v304
  %v307 = vsel %vm305, %v300, %v302
  %v308 = vsel %vm305, %v298, %v300
  %v309 = vsel %vm305, %v304, %v298
  %s310 = scalar_lea.vmem %s4, 7
  %v311 = vld [vmem:[%s310] ss:$8 sm:$0xf]
  %v313 = vlaneseq
  %v314 = vshrl.u32 %v313, 7
  %v315 = vsub.s32 0, %v314
  %v316 = vrot.slane %v311, %v315
  %v317 = vlaneseq
  %v318 = vshrl.u32 %v317, 7
  %v319 = vsub.s32 1, %v318
  %v320 = vrot.slane %v311, %v319
  %v321 = vlaneseq
  %v322 = vshrl.u32 %v321, 7
  %v323 = vsub.s32 2, %v322
  %v324 = vrot.slane %v311, %v323
  %v325 = vlaneseq
  %v326 = vshrl.u32 %v325, 7
  %v327 = vsub.s32 3, %v326
  %v328 = vrot.slane %v311, %v327
  %v333 = vmul.f32 %v308, %v316
  %v334 = vmul.f32 %v307, %v320
  %v335 = vmul.f32 %v306, %v324
  %v336 = vmul.f32 %v309, %v328
  %v337 = vpack.c.bf16 %v333, %v333
  %v338 = vpack.c.bf16 %v334, %v334
  %v339 = vpack.c.bf16 %v335, %v335
  %v340 = vpack.c.bf16 %v336, %v336
  %341 = vrot.lane.b32.xlu0 %v24, 111
  %v342 = vpop.permute.xlu0 %341
  %343 = vrot.lane.b32.xlu0 %v25, 111
  %v344 = vpop.permute.xlu0 %343
  %345 = vrot.lane.b32.xlu0 %v26, 111
  %v346 = vpop.permute.xlu0 %345
  %347 = vrot.lane.b32.xlu0 %v27, 111
  %v348 = vpop.permute.xlu0 %347
  %vm349 = vcmp.lt.s32.totalorder %v37, 111
  %v350 = vsel %vm349, %v346, %v348
  %v351 = vsel %vm349, %v344, %v346
  %v352 = vsel %vm349, %v342, %v344
  %v353 = vsel %vm349, %v348, %v342
  %s354 = scalar_lea.vmem %s4, 32
  %v355 = vld [vmem:[%s354] ss:$8 sm:$0xf]
  %v357 = vlaneseq
  %v358 = vshrl.u32 %v357, 7
  %v359 = vsub.s32 0, %v358
  %v360 = vrot.slane %v355, %v359
  %v361 = vlaneseq
  %v362 = vshrl.u32 %v361, 7
  %v363 = vsub.s32 1, %v362
  %v364 = vrot.slane %v355, %v363
  %v365 = vlaneseq
  %v366 = vshrl.u32 %v365, 7
  %v367 = vsub.s32 2, %v366
  %v368 = vrot.slane %v355, %v367
  %v369 = vlaneseq
  %v370 = vshrl.u32 %v369, 7
  %v371 = vsub.s32 3, %v370
  %v372 = vrot.slane %v355, %v371
  %v377 = vmul.f32 %v352, %v360
  %v378 = vmul.f32 %v351, %v364
  %v379 = vmul.f32 %v350, %v368
  %v380 = vmul.f32 %v353, %v372
  %v381 = vpack.c.bf16 %v377, %v377
  %v382 = vpack.c.bf16 %v378, %v378
  %v383 = vpack.c.bf16 %v379, %v379
  %v384 = vpack.c.bf16 %v380, %v380
  %v389 = vrot.slane %v113, 4
  %v390 = vrot.slane %v114, 4
  %v391 = vrot.slane %v115, 4
  %v392 = vrot.slane %v116, 4
  %v397 = vrot.slane %v201, 4
  %v398 = vrot.slane %v202, 4
  %v399 = vrot.slane %v203, 4
  %v400 = vrot.slane %v204, 4
  %v405 = vrot.slane %v249, 4
  %v406 = vrot.slane %v250, 4
  %v407 = vrot.slane %v251, 4
  %v408 = vrot.slane %v252, 4
  %v413 = vrot.slane %v337, 4
  %v414 = vrot.slane %v338, 4
  %v415 = vrot.slane %v339, 4
  %v416 = vrot.slane %v340, 4
  %vm417 = vcmask 1043456
  %v420 = vsel %vm417, %v69, %v389
  %v424 = vsel %vm417, %v70, %v390
  %v428 = vsel %vm417, %v71, %v391
  %v432 = vsel %vm417, %v72, %v392
  %v436 = vsel %vm417, %v157, %v397
  %v440 = vsel %vm417, %v158, %v398
  %v444 = vsel %vm417, %v159, %v399
  %v448 = vsel %vm417, %v160, %v400
  %v452 = vsel %vm417, %v205, %v405
  %v456 = vsel %vm417, %v206, %v406
  %v460 = vsel %vm417, %v207, %v407
  %v464 = vsel %vm417, %v208, %v408
  %v468 = vsel %vm417, %v293, %v413
  %v472 = vsel %vm417, %v294, %v414
  %v476 = vsel %vm417, %v295, %v415
  %v480 = vsel %vm417, %v296, %v416
  %v482 = vld [vmem:[%s1] sm:$0xf]
  %v483 = vld [vmem:[%s1 + $0x4] sm:$0xf]
  %v486 = vunpack.c.l.b16 %v482
  %v487 = vunpack.c.l.b16 %v483
  %v488 = vpack.c.b16 %v487, %v486
  %vm489 = vcmask 588800
  %v491 = vsel %vm489, %v488, 0
  %v494 = vsel %vm417, %v381, 0
  %v497 = vsel %vm417, %v382, 0
  %v500 = vsel %vm417, %v383, 0
  %v503 = vsel %vm417, %v384, 0
  %505 = vmatprep.subr.bf16.mxu0 %v424
  %506 = vmatpush1.bf16.msra.mxu0 %v420
  %507 = vmatprep.subr.bf16.mxu0 %v440
  %508 = vmatpush1.bf16.msra.mxu0 %v436
  %509 = vmatprep.subr.bf16.mxu0 %v456
  %510 = vmatpush1.bf16.msra.mxu0 %v452
  %511 = vmatprep.subr.bf16.mxu0 %v472
  %512 = vmatpush1.bf16.msra.mxu0 %v468
  %513 = vmatprep.subr.bf16.mxu0 %v497
  %514 = vmatpush1.bf16.msra.mxu0 %v494
  %515 = vmatprep.subr.bf16.mxu0 0
  %516 = vmatpush1.bf16.msra.mxu0 0
  %517 = vmatprep.subr.bf16.mxu0 0
  %518 = vmatpush1.bf16.msra.mxu0 0
  %519 = vmatprep.subr.bf16.mxu0 0
  %520 = vmatpush1.bf16.msra.mxu0 0
  %521 = vmatprep.subr.bf16.mxu0 0
  %522 = vmatpush1.bf16.msra.mxu0 0
  %523 = vmatprep.subr.bf16.mxu0 0
  %524 = vmatpush1.bf16.msra.mxu0 0
  %525 = vmatprep.subr.bf16.mxu0 0
  %526 = vmatpush1.bf16.msra.mxu0 0
  %527 = vmatprep.subr.bf16.mxu0 0
  %528 = vmatpush1.bf16.msra.mxu0 0
  %529 = vmatprep.subr.bf16.mxu0 0
  %530 = vmatpush1.bf16.msra.mxu0 0
  %531 = vmatprep.subr.bf16.mxu0 0
  %532 = vmatpush1.bf16.msra.mxu0 0
  %533 = vmatprep.subr.bf16.mxu0 0
  %534 = vmatpush1.bf16.msra.mxu0 0
  %535 = vmatprep.subr.bf16.mxu0 0
  %536 = vmatpush1.bf16.msra.mxu0 0
  %537 = vmatprep.mubr.bf16.mxu0 0
  %538 = vmatmul.mubr.bf16.gmra.mrb[0].mxu0 %v491
  %v539 = vpop.f32.mrb[0].mxu0
  %v540 = vadd.f32 0.0, %v539
  %v541 = vpop.f32.mrb[0].mxu0
  %v542 = vadd.f32 0.0, %v541
  %v543 = vpop.f32.mrb[0].mxu0
  %v544 = vadd.f32 0.0, %v543
  %v545 = vpop.f32.mrb[0].mxu0
  %v546 = vadd.f32 0.0, %v545
  %547 = vdwg.mxu0
  %548 = vmatprep.subr.bf16.mxu0 %v432
  %549 = vmatpush1.bf16.msra.mxu0 %v428
  %550 = vmatprep.subr.bf16.mxu0 %v448
  %551 = vmatpush1.bf16.msra.mxu0 %v444
  %552 = vmatprep.subr.bf16.mxu0 %v464
  %553 = vmatpush1.bf16.msra.mxu0 %v460
  %554 = vmatprep.subr.bf16.mxu0 %v480
  %555 = vmatpush1.bf16.msra.mxu0 %v476
  %556 = vmatprep.subr.bf16.mxu0 %v503
  %557 = vmatpush1.bf16.msra.mxu0 %v500
  %558 = vmatprep.subr.bf16.mxu0 0
  %559 = vmatpush1.bf16.msra.mxu0 0
  %560 = vmatprep.subr.bf16.mxu0 0
  %561 = vmatpush1.bf16.msra.mxu0 0
  %562 = vmatprep.subr.bf16.mxu0 0
  %563 = vmatpush1.bf16.msra.mxu0 0
  %564 = vmatprep.subr.bf16.mxu0 0
  %565 = vmatpush1.bf16.msra.mxu0 0
  %566 = vmatprep.subr.bf16.mxu0 0
  %567 = vmatpush1.bf16.msra.mxu0 0
  %568 = vmatprep.subr.bf16.mxu0 0
  %569 = vmatpush1.bf16.msra.mxu0 0
  %570 = vmatprep.subr.bf16.mxu0 0
  %571 = vmatpush1.bf16.msra.mxu0 0
  %572 = vmatprep.subr.bf16.mxu0 0
  %573 = vmatpush1.bf16.msra.mxu0 0
  %574 = vmatprep.subr.bf16.mxu0 0
  %575 = vmatpush1.bf16.msra.mxu0 0
  %576 = vmatprep.subr.bf16.mxu0 0
  %577 = vmatpush1.bf16.msra.mxu0 0
  %578 = vmatprep.subr.bf16.mxu0 0
  %579 = vmatpush1.bf16.msra.mxu0 0
  %580 = vmatprep.mubr.bf16.mxu0 0
  %581 = vmatmul.mubr.bf16.gmra.mrb[0].mxu0 %v491
  %v582 = vpop.f32.mrb[0].mxu0
  %v583 = vadd.f32 0.0, %v582
  %v584 = vpop.f32.mrb[0].mxu0
  %v585 = vadd.f32 0.0, %v584
  %v586 = vpop.f32.mrb[0].mxu0
  %v587 = vadd.f32 0.0, %v586
  %v588 = vpop.f32.mrb[0].mxu0
  %v589 = vadd.f32 0.0, %v588
  %590 = vdwg.mxu0
  %v591 = vld [vmem:[%s3] sm:$0xff]
  %v592 = vld [vmem:[%s3 + $0x8] sm:$0xff]
  %v593 = vld [vmem:[%s3 + $0x10] sm:$0xff]
  %v594 = vld [vmem:[%s3 + $0x18] sm:$0xff]
  %v595 = vmul.f32 %v591, %v540
  %v596 = vmul.f32 %v592, %v542
  %v597 = vmul.f32 %v593, %v583
  %v598 = vmul.f32 %v594, %v585
  %v599 = vld [vmem:[%s3 + $0x20] sm:$0xff]
  %v600 = vld [vmem:[%s3 + $0x28] sm:$0xff]
  %v601 = vld [vmem:[%s3 + $0x30] sm:$0xff]
  %v602 = vld [vmem:[%s3 + $0x38] sm:$0xff]
  %v603 = vadd.f32 %v595, %v599
  %v604 = vadd.f32 %v596, %v600
  %v605 = vadd.f32 %v597, %v601
  %v606 = vadd.f32 %v598, %v602
  %vm607 = vcmp.ge.f32.partialorder %v603, 0.0
  %vm608 = vcmp.ge.f32.partialorder %v604, 0.0
  %vm609 = vcmp.ge.f32.partialorder %v605, 0.0
  %vm610 = vcmp.ge.f32.partialorder %v606, 0.0
  %v611 = vmul.f32 %v603, 0.2
  %v612 = vmul.f32 %v604, 0.2
  %v613 = vmul.f32 %v605, 0.2
  %v614 = vmul.f32 %v606, 0.2
  %v615 = vsel %vm607, %v603, %v611
  %v616 = vsel %vm608, %v604, %v612
  %v617 = vsel %vm609, %v605, %v613
  %v618 = vsel %vm610, %v606, %v614
  %619 = vrot.lane.b32.xlu0 %v615, 17
  %v620 = vpop.permute.xlu0 %619
  %621 = vrot.lane.b32.xlu0 %v616, 17
  %v622 = vpop.permute.xlu0 %621
  %623 = vrot.lane.b32.xlu0 %v617, 17
  %v624 = vpop.permute.xlu0 %623
  %625 = vrot.lane.b32.xlu0 %v618, 17
  %v626 = vpop.permute.xlu0 %625
  %v627 = vsel %vm38, %v624, %v626
  %v628 = vsel %vm38, %v622, %v624
  %v629 = vsel %vm38, %v620, %v622
  %v630 = vsel %vm38, %v626, %v620
  %v631 = vmul.f32 %v630, %v48
  %v632 = vmul.f32 %v629, %v52
  %v633 = vmul.f32 %v628, %v56
  %v634 = vmul.f32 %v627, %v60
  %v635 = vpack.c.bf16 %v631, %v631
  %v636 = vpack.c.bf16 %v632, %v632
  %v637 = vpack.c.bf16 %v633, %v633
  %v638 = vpack.c.bf16 %v634, %v634
  %639 = vrot.lane.b32.xlu0 %v615, 16
  %v640 = vpop.permute.xlu0 %639
  %641 = vrot.lane.b32.xlu0 %v616, 16
  %v642 = vpop.permute.xlu0 %641
  %643 = vrot.lane.b32.xlu0 %v617, 16
  %v644 = vpop.permute.xlu0 %643
  %645 = vrot.lane.b32.xlu0 %v618, 16
  %v646 = vpop.permute.xlu0 %645
  %v647 = vsel %vm81, %v644, %v646
  %v648 = vsel %vm81, %v642, %v644
  %v649 = vsel %vm81, %v640, %v642
  %v650 = vsel %vm81, %v646, %v640
  %v651 = vmul.f32 %v650, %v92
  %v652 = vmul.f32 %v649, %v96
  %v653 = vmul.f32 %v648, %v100
  %v654 = vmul.f32 %v647, %v104
  %v655 = vpack.c.bf16 %v651, %v651
  %v656 = vpack.c.bf16 %v652, %v652
  %v657 = vpack.c.bf16 %v653, %v653
  %v658 = vpack.c.bf16 %v654, %v654
  %659 = vrot.lane.b32.xlu0 %v615, 15
  %v660 = vpop.permute.xlu0 %659
  %661 = vrot.lane.b32.xlu0 %v616, 15
  %v662 = vpop.permute.xlu0 %661
  %663 = vrot.lane.b32.xlu0 %v617, 15
  %v664 = vpop.permute.xlu0 %663
  %665 = vrot.lane.b32.xlu0 %v618, 15
  %v666 = vpop.permute.xlu0 %665
  %v667 = vsel %vm125, %v664, %v666
  %v668 = vsel %vm125, %v662, %v664
  %v669 = vsel %vm125, %v660, %v662
  %v670 = vsel %vm125, %v666, %v660
  %v671 = vmul.f32 %v670, %v136
  %v672 = vmul.f32 %v669, %v140
  %v673 = vmul.f32 %v668, %v144
  %v674 = vmul.f32 %v667, %v148
  %v675 = vpack.c.bf16 %v671, %v671
  %v676 = vpack.c.bf16 %v672, %v672
  %v677 = vpack.c.bf16 %v673, %v673
  %v678 = vpack.c.bf16 %v674, %v674
  %679 = vrot.lane.b32.xlu0 %v615, 1
  %v680 = vpop.permute.xlu0 %679
  %681 = vrot.lane.b32.xlu0 %v616, 1
  %v682 = vpop.permute.xlu0 %681
  %683 = vrot.lane.b32.xlu0 %v617, 1
  %v684 = vpop.permute.xlu0 %683
  %685 = vrot.lane.b32.xlu0 %v618, 1
  %v686 = vpop.permute.xlu0 %685
  %v687 = vsel %vm169, %v684, %v686
  %v688 = vsel %vm169, %v682, %v684
  %v689 = vsel %vm169, %v680, %v682
  %v690 = vsel %vm169, %v686, %v680
  %v691 = vmul.f32 %v690, %v180
  %v692 = vmul.f32 %v689, %v184
  %v693 = vmul.f32 %v688, %v188
  %v694 = vmul.f32 %v687, %v192
  %v695 = vpack.c.bf16 %v691, %v691
  %v696 = vpack.c.bf16 %v692, %v692
  %v697 = vpack.c.bf16 %v693, %v693
  %v698 = vpack.c.bf16 %v694, %v694
  %v699 = vpack.c.bf16 %v615, %v615
  %v700 = vpack.c.bf16 %v616, %v616
  %v701 = vpack.c.bf16 %v617, %v617
  %v702 = vpack.c.bf16 %v618, %v618
  %703 = vrot.lane.b32.xlu0 %v615, 127
  %v704 = vpop.permute.xlu0 %703
  %705 = vrot.lane.b32.xlu0 %v616, 127
  %v706 = vpop.permute.xlu0 %705
  %707 = vrot.lane.b32.xlu0 %v617, 127
  %v708 = vpop.permute.xlu0 %707
  %709 = vrot.lane.b32.xlu0 %v618, 127
  %v710 = vpop.permute.xlu0 %709
  %v711 = vsel %vm217, %v708, %v710
  %v712 = vsel %vm217, %v706, %v708
  %v713 = vsel %vm217, %v704, %v706
  %v714 = vsel %vm217, %v710, %v704
  %v715 = vmul.f32 %v713, %v228
  %v716 = vmul.f32 %v712, %v232
  %v717 = vmul.f32 %v711, %v236
  %v718 = vmul.f32 %v714, %v240
  %v719 = vpack.c.bf16 %v715, %v715
  %v720 = vpack.c.bf16 %v716, %v716
  %v721 = vpack.c.bf16 %v717, %v717
  %v722 = vpack.c.bf16 %v718, %v718
  %723 = vrot.lane.b32.xlu0 %v615, 113
  %v724 = vpop.permute.xlu0 %723
  %725 = vrot.lane.b32.xlu0 %v616, 113
  %v726 = vpop.permute.xlu0 %725
  %727 = vrot.lane.b32.xlu0 %v617, 113
  %v728 = vpop.permute.xlu0 %727
  %729 = vrot.lane.b32.xlu0 %v618, 113
  %v730 = vpop.permute.xlu0 %729
  %v731 = vsel %vm261, %v728, %v730
  %v732 = vsel %vm261, %v726, %v728
  %v733 = vsel %vm261, %v724, %v726
  %v734 = vsel %vm261, %v730, %v724
  %v735 = vmul.f32 %v733, %v272
  %v736 = vmul.f32 %v732, %v276
  %v737 = vmul.f32 %v731, %v280
  %v738 = vmul.f32 %v734, %v284
  %v739 = vpack.c.bf16 %v735, %v735
  %v740 = vpack.c.bf16 %v736, %v736
  %v741 = vpack.c.bf16 %v737, %v737
  %v742 = vpack.c.bf16 %v738, %v738
  %743 = vrot.lane.b32.xlu0 %v615, 112
  %v744 = vpop.permute.xlu0 %743
  %745 = vrot.lane.b32.xlu0 %v616, 112
  %v746 = vpop.permute.xlu0 %745
  %747 = vrot.lane.b32.xlu0 %v617, 112
  %v748 = vpop.permute.xlu0 %747
  %749 = vrot.lane.b32.xlu0 %v618, 112
  %v750 = vpop.permute.xlu0 %749
  %v751 = vsel %vm305, %v748, %v750
  %v752 = vsel %vm305, %v746, %v748
  %v753 = vsel %vm305, %v744, %v746
  %v754 = vsel %vm305, %v750, %v744
  %v755 = vmul.f32 %v753, %v316
  %v756 = vmul.f32 %v752, %v320
  %v757 = vmul.f32 %v751, %v324
  %v758 = vmul.f32 %v754, %v328
  %v759 = vpack.c.bf16 %v755, %v755
  %v760 = vpack.c.bf16 %v756, %v756
  %v761 = vpack.c.bf16 %v757, %v757
  %v762 = vpack.c.bf16 %v758, %v758
  %763 = vrot.lane.b32.xlu0 %v615, 111
  %v764 = vpop.permute.xlu0 %763
  %765 = vrot.lane.b32.xlu0 %v616, 111
  %v766 = vpop.permute.xlu0 %765
  %767 = vrot.lane.b32.xlu0 %v617, 111
  %v768 = vpop.permute.xlu0 %767
  %769 = vrot.lane.b32.xlu0 %v618, 111
  %v770 = vpop.permute.xlu0 %769
  %v771 = vsel %vm349, %v768, %v770
  %v772 = vsel %vm349, %v766, %v768
  %v773 = vsel %vm349, %v764, %v766
  %v774 = vsel %vm349, %v770, %v764
  %v775 = vmul.f32 %v773, %v360
  %v776 = vmul.f32 %v772, %v364
  %v777 = vmul.f32 %v771, %v368
  %v778 = vmul.f32 %v774, %v372
  %v779 = vpack.c.bf16 %v775, %v775
  %v780 = vpack.c.bf16 %v776, %v776
  %v781 = vpack.c.bf16 %v777, %v777
  %v782 = vpack.c.bf16 %v778, %v778
  %v787 = vrot.slane %v655, 4
  %v788 = vrot.slane %v656, 4
  %v789 = vrot.slane %v657, 4
  %v790 = vrot.slane %v658, 4
  %v795 = vrot.slane %v695, 4
  %v796 = vrot.slane %v696, 4
  %v797 = vrot.slane %v697, 4
  %v798 = vrot.slane %v698, 4
  %v803 = vrot.slane %v719, 4
  %v804 = vrot.slane %v720, 4
  %v805 = vrot.slane %v721, 4
  %v806 = vrot.slane %v722, 4
  %v811 = vrot.slane %v759, 4
  %v812 = vrot.slane %v760, 4
  %v813 = vrot.slane %v761, 4
  %v814 = vrot.slane %v762, 4
  %v817 = vsel %vm417, %v635, %v787
  %v821 = vsel %vm417, %v636, %v788
  %v825 = vsel %vm417, %v637, %v789
  %v829 = vsel %vm417, %v638, %v790
  %v833 = vsel %vm417, %v675, %v795
  %v837 = vsel %vm417, %v676, %v796
  %v841 = vsel %vm417, %v677, %v797
  %v845 = vsel %vm417, %v678, %v798
  %v849 = vsel %vm417, %v699, %v803
  %v853 = vsel %vm417, %v700, %v804
  %v857 = vsel %vm417, %v701, %v805
  %v861 = vsel %vm417, %v702, %v806
  %v865 = vsel %vm417, %v739, %v811
  %v869 = vsel %vm417, %v740, %v812
  %v873 = vsel %vm417, %v741, %v813
  %v877 = vsel %vm417, %v742, %v814
  %v879 = vld [vmem:[%s2] sm:$0xf]
  %v881 = vsel %vm489, %v879, 0
  %v884 = vsel %vm417, %v779, 0
  %v887 = vsel %vm417, %v780, 0
  %v890 = vsel %vm417, %v781, 0
  %v893 = vsel %vm417, %v782, 0
  %895 = vmatprep.subr.bf16.mxu0 %v821
  %896 = vmatpush1.bf16.msra.mxu0 %v817
  %897 = vmatprep.subr.bf16.mxu0 %v837
  %898 = vmatpush1.bf16.msra.mxu0 %v833
  %899 = vmatprep.subr.bf16.mxu0 %v853
  %900 = vmatpush1.bf16.msra.mxu0 %v849
  %901 = vmatprep.subr.bf16.mxu0 %v869
  %902 = vmatpush1.bf16.msra.mxu0 %v865
  %903 = vmatprep.subr.bf16.mxu0 %v887
  %904 = vmatpush1.bf16.msra.mxu0 %v884
  %905 = vmatprep.subr.bf16.mxu0 0
  %906 = vmatpush1.bf16.msra.mxu0 0
  %907 = vmatprep.subr.bf16.mxu0 0
  %908 = vmatpush1.bf16.msra.mxu0 0
  %909 = vmatprep.subr.bf16.mxu0 0
  %910 = vmatpush1.bf16.msra.mxu0 0
  %911 = vmatprep.subr.bf16.mxu0 0
  %912 = vmatpush1.bf16.msra.mxu0 0
  %913 = vmatprep.subr.bf16.mxu0 0
  %914 = vmatpush1.bf16.msra.mxu0 0
  %915 = vmatprep.subr.bf16.mxu0 0
  %916 = vmatpush1.bf16.msra.mxu0 0
  %917 = vmatprep.subr.bf16.mxu0 0
  %918 = vmatpush1.bf16.msra.mxu0 0
  %919 = vmatprep.subr.bf16.mxu0 0
  %920 = vmatpush1.bf16.msra.mxu0 0
  %921 = vmatprep.subr.bf16.mxu0 0
  %922 = vmatpush1.bf16.msra.mxu0 0
  %923 = vmatprep.subr.bf16.mxu0 0
  %924 = vmatpush1.bf16.msra.mxu0 0
  %925 = vmatprep.subr.bf16.mxu0 0
  %926 = vmatpush1.bf16.msra.mxu0 0
  %927 = vmatprep.mubr.bf16.mxu0 0
  %928 = vmatmul.mubr.bf16.gmra.mrb[0].mxu0 %v881
  %v929 = vpop.f32.mrb[0].mxu0
  %v930 = vadd.f32 0.0, %v929
  %v931 = vpop.f32.mrb[0].mxu0
  %v932 = vadd.f32 0.0, %v931
  %v933 = vpop.f32.mrb[0].mxu0
  %v934 = vpop.f32.mrb[0].mxu0
  %935 = vdwg.mxu0
  %936 = vmatprep.subr.bf16.mxu0 %v829
  %937 = vmatpush1.bf16.msra.mxu0 %v825
  %938 = vmatprep.subr.bf16.mxu0 %v845
  %939 = vmatpush1.bf16.msra.mxu0 %v841
  %940 = vmatprep.subr.bf16.mxu0 %v861
  %941 = vmatpush1.bf16.msra.mxu0 %v857
  %942 = vmatprep.subr.bf16.mxu0 %v877
  %943 = vmatpush1.bf16.msra.mxu0 %v873
  %944 = vmatprep.subr.bf16.mxu0 %v893
  %945 = vmatpush1.bf16.msra.mxu0 %v890
  %946 = vmatprep.subr.bf16.mxu0 0
  %947 = vmatpush1.bf16.msra.mxu0 0
  %948 = vmatprep.subr.bf16.mxu0 0
  %949 = vmatpush1.bf16.msra.mxu0 0
  %950 = vmatprep.subr.bf16.mxu0 0
  %951 = vmatpush1.bf16.msra.mxu0 0
  %952 = vmatprep.subr.bf16.mxu0 0
  %953 = vmatpush1.bf16.msra.mxu0 0
  %954 = vmatprep.subr.bf16.mxu0 0
  %955 = vmatpush1.bf16.msra.mxu0 0
  %956 = vmatprep.subr.bf16.mxu0 0
  %957 = vmatpush1.bf16.msra.mxu0 0
  %958 = vmatprep.subr.bf16.mxu0 0
  %959 = vmatpush1.bf16.msra.mxu0 0
  %960 = vmatprep.subr.bf16.mxu0 0
  %961 = vmatpush1.bf16.msra.mxu0 0
  %962 = vmatprep.subr.bf16.mxu0 0
  %963 = vmatpush1.bf16.msra.mxu0 0
  %964 = vmatprep.subr.bf16.mxu0 0
  %965 = vmatpush1.bf16.msra.mxu0 0
  %966 = vmatprep.subr.bf16.mxu0 0
  %967 = vmatpush1.bf16.msra.mxu0 0
  %968 = vmatprep.mubr.bf16.mxu0 0
  %969 = vmatmul.mubr.bf16.gmra.mrb[0].mxu0 %v881
  %v970 = vpop.f32.mrb[0].mxu0
  %v971 = vadd.f32 0.0, %v970
  %v972 = vpop.f32.mrb[0].mxu0
  %v973 = vadd.f32 0.0, %v972
  %v974 = vpop.f32.mrb[0].mxu0
  %v975 = vpop.f32.mrb[0].mxu0
  %976 = vdwg.mxu0
  %v977 = vld [vmem:[%s3 + $0x40] sm:$0xff]
  %v978 = vld [vmem:[%s3 + $0x48] sm:$0xff]
  %v979 = vld [vmem:[%s3 + $0x50] sm:$0xff]
  %v980 = vld [vmem:[%s3 + $0x58] sm:$0xff]
  %v981 = vmul.f32 %v977, %v930
  %v982 = vmul.f32 %v978, %v932
  %v983 = vmul.f32 %v979, %v971
  %v984 = vmul.f32 %v980, %v973
  %v985 = vld [vmem:[%s3 + $0x60] sm:$0xff]
  %v986 = vld [vmem:[%s3 + $0x68] sm:$0xff]
  %v987 = vld [vmem:[%s3 + $0x70] sm:$0xff]
  %v988 = vld [vmem:[%s3 + $0x78] sm:$0xff]
  %v989 = vadd.f32 %v981, %v985
  %v990 = vadd.f32 %v982, %v986
  %v991 = vadd.f32 %v983, %v987
  %v992 = vadd.f32 %v984, %v988
  %v993 = vadd.f32 %v989, %v544
  %v994 = vadd.f32 %v990, %v546
  %v995 = vadd.f32 %v991, %v587
  %v996 = vadd.f32 %v992, %v589
  %v997 = vld [vmem:[%s5] sm:$0xf]
  %v998 = vld [vmem:[%s5 + $0x4] sm:$0xf]
  %v999 = vld [vmem:[%s5 + $0x8] sm:$0xf]
  %v1000 = vld [vmem:[%s5 + $0xc] sm:$0xf]
  %v1001 = vld [vmem:[%s5 + $0x10] sm:$0xf]
  %v1002 = vld [vmem:[%s5 + $0x14] sm:$0xf]
  %v1003 = vld [vmem:[%s5 + $0x18] sm:$0xf]
  %v1004 = vld [vmem:[%s5 + $0x1c] sm:$0xf]
  %v1005 = vld [vmem:[%s5 + $0x20] sm:$0xf]
  %v1006 = vld [vmem:[%s5 + $0x24] sm:$0xf]
  %v1007 = vld [vmem:[%s5 + $0x28] sm:$0xf]
  %v1008 = vld [vmem:[%s5 + $0x2c] sm:$0xf]
  %v1009 = vld [vmem:[%s5 + $0x30] sm:$0xf]
  %v1010 = vld [vmem:[%s5 + $0x34] sm:$0xf]
  %v1011 = vld [vmem:[%s5 + $0x38] sm:$0xf]
  %v1012 = vld [vmem:[%s5 + $0x3c] sm:$0xf]
  %v1013 = vld [vmem:[%s5 + $0x40] sm:$0xf]
  %v1014 = vld [vmem:[%s5 + $0x44] sm:$0xf]
  %v1015 = vld [vmem:[%s5 + $0x48] sm:$0xf]
  %v1016 = vld [vmem:[%s5 + $0x4c] sm:$0xf]
  %v1017 = vld [vmem:[%s5 + $0x50] sm:$0xf]
  %v1018 = vld [vmem:[%s5 + $0x54] sm:$0xf]
  %v1019 = vld [vmem:[%s5 + $0x58] sm:$0xf]
  %v1020 = vld [vmem:[%s5 + $0x5c] sm:$0xf]
  %v1021 = vld [vmem:[%s5 + $0x60] sm:$0xf]
  %v1022 = vld [vmem:[%s5 + $0x64] sm:$0xf]
  %v1023 = vld [vmem:[%s5 + $0x68] sm:$0xf]
  %v1024 = vld [vmem:[%s5 + $0x6c] sm:$0xf]
  %v1025 = vld [vmem:[%s5 + $0x70] sm:$0xf]
  %v1026 = vld [vmem:[%s5 + $0x74] sm:$0xf]
  %v1027 = vld [vmem:[%s5 + $0x78] sm:$0xf]
  %v1028 = vld [vmem:[%s5 + $0x7c] sm:$0xf]
  %v1029 = vpack.c.bf16 %v993, %v993
  %v1030 = vpack.c.bf16 %v994, %v994
  %v1063 = vunpack.c.l.b16 %v997
  %v1064 = vunpack.c.l.b16 %v998
  %v1065 = vunpack.c.l.b16 %v999
  %v1066 = vunpack.c.l.b16 %v1000
  %v1067 = vunpack.c.l.b16 %v1001
  %v1068 = vunpack.c.l.b16 %v1002
  %v1069 = vunpack.c.l.b16 %v1003
  %v1070 = vunpack.c.l.b16 %v1004
  %v1071 = vunpack.c.l.b16 %v1005
  %v1072 = vunpack.c.l.b16 %v1006
  %v1073 = vunpack.c.l.b16 %v1007
  %v1074 = vunpack.c.l.b16 %v1008
  %v1075 = vunpack.c.l.b16 %v1009
  %v1076 = vunpack.c.l.b16 %v1010
  %v1077 = vunpack.c.l.b16 %v1011
  %v1078 = vunpack.c.l.b16 %v1012
  %v1079 = vunpack.c.l.b16 %v1013
  %v1080 = vunpack.c.l.b16 %v1014
  %v1081 = vunpack.c.l.b16 %v1015
  %v1082 = vunpack.c.l.b16 %v1016
  %v1083 = vunpack.c.l.b16 %v1017
  %v1084 = vunpack.c.l.b16 %v1018
  %v1085 = vunpack.c.l.b16 %v1019
  %v1086 = vunpack.c.l.b16 %v1020
  %v1087 = vunpack.c.l.b16 %v1021
  %v1088 = vunpack.c.l.b16 %v1022
  %v1089 = vunpack.c.l.b16 %v1023
  %v1090 = vunpack.c.l.b16 %v1024
  %v1091 = vunpack.c.l.b16 %v1025
  %v1092 = vunpack.c.l.b16 %v1026
  %v1093 = vunpack.c.l.b16 %v1027
  %v1094 = vunpack.c.l.b16 %v1028
  %v1095 = vpack.c.b16 %v1064, %v1063
  %v1096 = vpack.c.b16 %v1066, %v1065
  %v1097 = vpack.c.b16 %v1068, %v1067
  %v1098 = vpack.c.b16 %v1070, %v1069
  %v1099 = vpack.c.b16 %v1072, %v1071
  %v1100 = vpack.c.b16 %v1074, %v1073
  %v1101 = vpack.c.b16 %v1076, %v1075
  %v1102 = vpack.c.b16 %v1078, %v1077
  %v1103 = vpack.c.b16 %v1080, %v1079
  %v1104 = vpack.c.b16 %v1082, %v1081
  %v1105 = vpack.c.b16 %v1084, %v1083
  %v1106 = vpack.c.b16 %v1086, %v1085
  %v1107 = vpack.c.b16 %v1088, %v1087
  %v1108 = vpack.c.b16 %v1090, %v1089
  %v1109 = vpack.c.b16 %v1092, %v1091
  %v1110 = vpack.c.b16 %v1094, %v1093
  %1127 = vmatprep.subr.bf16.mxu0 0
  %1128 = vmatpush1.bf16.msra.mxu0 %v1095
  %1129 = vmatprep.subr.bf16.mxu0 0
  %1130 = vmatpush1.bf16.msra.mxu0 %v1096
  %1131 = vmatprep.subr.bf16.mxu0 0
  %1132 = vmatpush1.bf16.msra.mxu0 %v1097
  %1133 = vmatprep.subr.bf16.mxu0 0
  %1134 = vmatpush1.bf16.msra.mxu0 %v1098
  %1135 = vmatprep.subr.bf16.mxu0 0
  %1136 = vmatpush1.bf16.msra.mxu0 %v1099
  %1137 = vmatprep.subr.bf16.mxu0 0
  %1138 = vmatpush1.bf16.msra.mxu0 %v1100
  %1139 = vmatprep.subr.bf16.mxu0 0
  %1140 = vmatpush1.bf16.msra.mxu0 %v1101
  %1141 = vmatprep.subr.bf16.mxu0 0
  %1142 = vmatpush1.bf16.msra.mxu0 %v1102
  %1143 = vmatprep.subr.bf16.mxu0 0
  %1144 = vmatpush1.bf16.msra.mxu0 %v1103
  %1145 = vmatprep.subr.bf16.mxu0 0
  %1146 = vmatpush1.bf16.msra.mxu0 %v1104
  %1147 = vmatprep.subr.bf16.mxu0 0
  %1148 = vmatpush1.bf16.msra.mxu0 %v1105
  %1149 = vmatprep.subr.bf16.mxu0 0
  %1150 = vmatpush1.bf16.msra.mxu0 %v1106
  %1151 = vmatprep.subr.bf16.mxu0 0
  %1152 = vmatpush1.bf16.msra.mxu0 %v1107
  %1153 = vmatprep.subr.bf16.mxu0 0
  %1154 = vmatpush1.bf16.msra.mxu0 %v1108
  %1155 = vmatprep.subr.bf16.mxu0 0
  %1156 = vmatpush1.bf16.msra.mxu0 %v1109
  %1157 = vmatprep.subr.bf16.mxu0 0
  %1158 = vmatpush1.bf16.msra.mxu0 %v1110
  %1159 = vmatprep.mubr.bf16.mxu0 %v1030
  %1160 = vmatmul.mubr.bf16.gmra.mrb[0].mxu0 %v1029
  %v1161 = vpop.f32.mrb[0].mxu0
  %v1162 = vadd.f32 0.0, %v1161
  %v1163 = vpop.f32.mrb[0].mxu0
  %v1164 = vpop.f32.mrb[0].mxu0
  %v1165 = vpop.f32.mrb[0].mxu0
  %1166 = vdwg.mxu0
  %v1167 = vpack.c.bf16 %v995, %v995
  %v1168 = vpack.c.bf16 %v996, %v996
  %1169 = vmatprep.subr.bf16.mxu0 0
  %1170 = vmatpush1.bf16.msra.mxu0 %v1095
  %1171 = vmatprep.subr.bf16.mxu0 0
  %1172 = vmatpush1.bf16.msra.mxu0 %v1096
  %1173 = vmatprep.subr.bf16.mxu0 0
  %1174 = vmatpush1.bf16.msra.mxu0 %v1097
  %1175 = vmatprep.subr.bf16.mxu0 0
  %1176 = vmatpush1.bf16.msra.mxu0 %v1098
  %1177 = vmatprep.subr.bf16.mxu0 0
  %1178 = vmatpush1.bf16.msra.mxu0 %v1099
  %1179 = vmatprep.subr.bf16.mxu0 0
  %1180 = vmatpush1.bf16.msra.mxu0 %v1100
  %1181 = vmatprep.subr.bf16.mxu0 0
  %1182 = vmatpush1.bf16.msra.mxu0 %v1101
  %1183 = vmatprep.subr.bf16.mxu0 0
  %1184 = vmatpush1.bf16.msra.mxu0 %v1102
  %1185 = vmatprep.subr.bf16.mxu0 0
  %1186 = vmatpush1.bf16.msra.mxu0 %v1103
  %1187 = vmatprep.subr.bf16.mxu0 0
  %1188 = vmatpush1.bf16.msra.mxu0 %v1104
  %1189 = vmatprep.subr.bf16.mxu0 0
  %1190 = vmatpush1.bf16.msra.mxu0 %v1105
  %1191 = vmatprep.subr.bf16.mxu0 0
  %1192 = vmatpush1.bf16.msra.mxu0 %v1106
  %1193 = vmatprep.subr.bf16.mxu0 0
  %1194 = vmatpush1.bf16.msra.mxu0 %v1107
  %1195 = vmatprep.subr.bf16.mxu0 0
  %1196 = vmatpush1.bf16.msra.mxu0 %v1108
  %1197 = vmatprep.subr.bf16.mxu0 0
  %1198 = vmatpush1.bf16.msra.mxu0 %v1109
  %1199 = vmatprep.subr.bf16.mxu0 0
  %1200 = vmatpush1.bf16.msra.mxu0 %v1110
  %1201 = vmatprep.mubr.bf16.mxu0 %v1168
  %1202 = vmatmul.mubr.bf16.gmra.mrb[0].mxu0 %v1167
  %v1203 = vpop.f32.mrb[0].mxu0
  %v1204 = vadd.f32 0.0, %v1203
  %v1205 = vpop.f32.mrb[0].mxu0
  %v1206 = vpop.f32.mrb[0].mxu0
  %v1207 = vpop.f32.mrb[0].mxu0
  %1208 = vdwg.mxu0
  %1210 = vrot.lane.b32.xlu0 %v1204, 64
  %v1211 = vpop.permute.xlu0 %1210
  %vm1213 = vcmask 523264
  %v1214 = vsel %vm1213, %v1162, %v1211
  %vm1215 = vcmp.ge.f32.partialorder %v1214, 0.0
  %v1216 = vmul.f32 %v1214, 0.2
  %v1217 = vsel %vm1215, %v1214, %v1216
  %1218 = vst [vmem:[%s6] sm:$0xff] %v1217
  // Predicated region
  $region26: #{resblock_v2_forward.1} parent=0 // pred_check
    _
  $region27: #{resblock_v2_forward.1} parent=0 // pred_check_branch
    %1220 = sbr.rel (0) target = $region29
  $region28: #{resblock_v2_forward.1} parent=0 // pred_region
    _
  $region29: #{resblock_v2_forward.1} parent=0 // pred_fallthru
    _
  // Predicated region
  $region30: #{resblock_v2_forward.1} parent=0 // pred_check
    _
  $region31: #{resblock_v2_forward.1} parent=0 // pred_check_branch
    %1222 = sbr.rel (0) target = $region33
  $region32: #{resblock_v2_forward.1} parent=0 // pred_region
    _
  $region33: #{resblock_v2_forward.1} parent=0 // pred_fallthru
    _

</llo_original>
